<compile_context>
chip_gen: v7x
topology: tpu7x:2x2x1
jax: 0.10.0
libtpu: 0.0.40
codegen_flags: <defaults>
</compile_context>

<pallas_src>
import functools

import jax
import jax.numpy as jnp
from jax.experimental import pallas as pl
from jax.experimental.pallas import tpu as pltpu

LANES = 128
SUBLANES = 8
# Per-block byte budget: 2 MiB per block (see header).
MAX_BLOCK_BYTES = 2 * 1024 * 1024


def _copy_kernel(x_ref, o_ref):
    # Identity copy of the current block.
    o_ref[...] = x_ref[...]


def _resolve_dims(total, dims):
    """Replicate torch.Tensor.view dim resolution (supports a single -1)."""
    dims = list(dims)
    if -1 in dims:
        idx = dims.index(-1)
        rest = 1
        for j, d in enumerate(dims):
            if j != idx:
                rest *= d
        assert rest != 0 and total % rest == 0, "view: cannot infer -1 dimension"
        dims[idx] = total // rest
    prod = 1
    for d in dims:
        prod *= d
    assert prod == total, "view: shape is invalid for input size"
    return tuple(dims)


@functools.partial(jax.jit, static_argnames=("out_dims",))
def _view_impl(x, *, out_dims):
    total = x.size
    itemsize = jnp.dtype(x.dtype).itemsize
    max_block_elems = MAX_BLOCK_BYTES // itemsize
    # Minimum sublane multiple for this dtype (packed dtypes need more rows).
    min_rows = SUBLANES * max(1, 4 // itemsize)

    flat = x.reshape(-1)

    # Lane-dense (rows, 128) slab.  Padding only in the rare case the element
    # count is not a multiple of 128 (uncommon for NN tensors).
    pad = (-total) % LANES
    if pad:
        flat = jnp.pad(flat, (0, pad))
    rows = (total + pad) // LANES

    # Block rows: biggest multiple of min_rows within the 2 MiB budget.
    max_rows_per_block = max(
        min_rows, (max_block_elems // LANES) // min_rows * min_rows
    )
    if rows <= max_rows_per_block:
        # Single block == full slab shape (exempt from the (8,128) rule).
        block_rows = rows
    else:
        block_rows = max_rows_per_block

    block_shape = (block_rows, LANES)
    grid = (pl.cdiv(rows, block_rows),)
    slab = flat.reshape(rows, LANES)

    out_slab = pl.pallas_call(
        _copy_kernel,
        out_shape=jax.ShapeDtypeStruct(slab.shape, x.dtype),
        grid_spec=pltpu.PrefetchScalarGridSpec(
            num_scalar_prefetch=0,
            grid=grid,
            in_specs=[pl.BlockSpec(block_shape, lambda i: (i, 0))],
            out_specs=pl.BlockSpec(block_shape, lambda i: (i, 0)),
        ),
        cost_estimate=pl.CostEstimate(
            flops=0,
            transcendentals=0,
            bytes_accessed=2 * total * itemsize,
        ),
        compiler_params=pltpu.CompilerParams(
            dimension_semantics=("parallel",),
        ),
    )(slab)

    out_flat = out_slab.reshape(-1)
    if out_flat.size != total:
        out_flat = out_flat[:total]
    return out_flat.reshape(out_dims)


def pallas_view(x, *dims):
    out_dims = _resolve_dims(x.size, dims)
    return _view_impl(x, out_dims=out_dims)


if __name__ == "__main__":
    key = jax.random.PRNGKey(0)
    # Input consistent with an NCHW feature map: [2, 4, 16, 16]
    x = jax.random.normal(key, (2, 4, 16, 16), dtype=jnp.float32)

    # View to (2, 4, 256) — same semantics as x.view(2, 4, -1) in PyTorch.
    y = pallas_view(x, 2, 4, -1)
    y = jax.block_until_ready(y)

    # Verify against the pure-JAX reference (row-major reshape).
    ref = x.reshape(2, 4, 256)
    assert y.shape == (2, 4, 256), y.shape
    assert y.dtype == x.dtype
    assert bool(jnp.all(y == ref)), "view copy mismatch"

    print("KERNEL_OK")
</pallas_src>

<mosaic_0001>
module attributes {stable_mosaic.version = 11 : i64} {
  func.func @_copy_kernel(%arg0: i32, %arg1: memref<16x128xf32, #tpu.memory_space<vmem>>, %arg2: memref<16x128xf32, #tpu.memory_space<vmem>>) attributes {dimension_semantics = [#tpu.dimension_semantics<parallel>], iteration_bounds = array<i64: 1>, scalar_prefetch = 0 : i64, scratch_operands = 0 : i64, tpu.core_type = #tpu.core_type<tc>, window_params = [{transform_indices = @transform_0, window_bounds = array<i64: 16, 128>}, {transform_indices = @transform_1, window_bounds = array<i64: 16, 128>}]} {
    %c0 = arith.constant 0 : index
    %c0_0 = arith.constant 0 : index
    %0 = vector.load %arg1[%c0, %c0_0] : memref<16x128xf32, #tpu.memory_space<vmem>>, vector<16x128xf32>
    %c0_1 = arith.constant 0 : index
    %c0_2 = arith.constant 0 : index
    %1 = vector.load %arg2[%c0_1, %c0_2] : memref<16x128xf32, #tpu.memory_space<vmem>>, vector<16x128xf32>
    tpu.vector_store %arg2[%c0_1, %c0_2], %0 {strides = array<i32>} : memref<16x128xf32, #tpu.memory_space<vmem>>, vector<16x128xf32>,
    return
  }
  func.func @transform_0(%arg0: i32) -> (i32, i32) {
    %c0_i32 = arith.constant 0 : i32
    %c0_i32_0 = arith.constant 0 : i32
    return %arg0, %c0_i32 : i32, i32
  }
  func.func @transform_1(%arg0: i32) -> (i32, i32) {
    %c0_i32 = arith.constant 0 : i32
    %c0_i32_0 = arith.constant 0 : i32
    return %arg0, %c0_i32 : i32, i32
  }
}

</mosaic_0001>

<llo_original>
// kernel: _view_impl.1
$region0: #{_view_impl.1}
  #allocation0 [shape = 'u32[]', space=smem, size = 0x4, offset = 0x4, fixed_abs, tag = 'smem constant byte address 0x4 - core index']
  #allocation1 [shape = 'u32[144,128]{1,0:T(1,128)}', space=vmem, size = 0x12000, scoped, tag = 'internal scratch']
  %s0 = inlined_call_operand.vmem [shape: f32[16,128], index: 0, kind: input, shape index: {}]
  %s1 = inlined_call_operand.vmem [shape: f32[16,128], index: 1, kind: output, shape index: {}]
  %s2 = sld [smem:[#allocation0]]
  $region14: #{_view_impl.1} parent=0
    _
  %s4 = ssub.s32 1, %s2
  %s5 = scalar_select 0, %s4, %s2
  // Predicated region
  $region2: #{_view_impl.1} parent=0 // pred_check
    _
  $region3: #{_view_impl.1} parent=0 // pred_check_branch
    %7 = sbr.rel (0) target = $region5
  $region4: #{_view_impl.1} parent=0 // pred_region
    _
  $region5: #{_view_impl.1} parent=0 // pred_fallthru
    _
  %v8 = vld [vmem:[%s0] sm:$0xff]
  %v9 = vld [vmem:[%s0 + $0x8] sm:$0xff]
  %10 = vst [vmem:[%s1] sm:$0xff] %v8
  %11 = vst [vmem:[%s1 + $0x8] sm:$0xff] %v9
  // Predicated region
  $region6: #{_view_impl.1} parent=0 // pred_check
    _
  $region7: #{_view_impl.1} parent=0 // pred_check_branch
    %13 = sbr.rel (0) target = $region9
  $region8: #{_view_impl.1} parent=0 // pred_region
    _
  $region9: #{_view_impl.1} parent=0 // pred_fallthru
    _
  // Predicated region
  $region10: #{_view_impl.1} parent=0 // pred_check
    _
  $region11: #{_view_impl.1} parent=0 // pred_check_branch
    %15 = sbr.rel (0) target = $region13
  $region12: #{_view_impl.1} parent=0 // pred_region
    _
  $region13: #{_view_impl.1} parent=0 // pred_fallthru
    _

</llo_original>
